<compile_context>
chip_gen: v7x
topology: tpu7x:2x2x1
jax: 0.10.0
libtpu: 0.0.40
codegen_flags: <defaults>
</compile_context>

<pallas_src>
import jax
import jax.numpy as jnp
from jax.experimental import pallas as pl
from jax.experimental.pallas import tpu as pltpu

OUT_PAD = 128       # fc output padded to a full lane width -> unmasked vst
MAX_B_TILE = 512    # batch rows per grid step at large batch (near HBM roofline)


def _vnc_kernel(x_ref, w1t_ref, w2t_ref, wfct_ref, b_ref, o_ref):
    # x arrives in the caller's dtype (f32 or bf16); the cast below is a no-op
    # for bf16 inputs.  All matmuls accumulate in f32 on the MXU.
    x = x_ref[...].astype(jnp.bfloat16)
    # h1 = relu(x @ W1^T)   -> (tile, 128)
    h1 = jnp.dot(x, w1t_ref[...], preferred_element_type=jnp.float32)
    h1 = jnp.maximum(h1, 0.0).astype(jnp.bfloat16)
    # h2 = relu(h1 @ W2^T)  -> (tile, 64)
    h2 = jnp.dot(h1, w2t_ref[...], preferred_element_type=jnp.float32)
    h2 = jnp.maximum(h2, 0.0).astype(jnp.bfloat16)
    # out = h2 @ Wfc^T + b  -> (tile, OUT_PAD); tail columns are zero weight/bias.
    out = jnp.dot(h2, wfct_ref[...], preferred_element_type=jnp.float32)
    # f32 bias add, single downcast on writeback (bf16 halves output bytes).
    o_ref[...] = (out + b_ref[...]).astype(o_ref.dtype)


def prepare_params(w1, w2, w_fc, b_fc):
    """One-time conversion of PyTorch-layout f32 params to kernel layout.

    Transpose + bf16 cast + lane padding happen here exactly once, never per call.
    """
    num_classes, fc_in = w_fc.shape
    w1t = jnp.asarray(w1.T, dtype=jnp.bfloat16)                 # (input_size, 128)
    w2t = jnp.asarray(w2.T, dtype=jnp.bfloat16)                 # (128, 64)
    wfct = jnp.zeros((fc_in, OUT_PAD), dtype=jnp.bfloat16)      # (64, 128) padded
    wfct = wfct.at[:, :num_classes].set(w_fc.T.astype(jnp.bfloat16))
    b = jnp.zeros((1, OUT_PAD), dtype=jnp.float32)
    b = b.at[0, :num_classes].set(b_fc.astype(jnp.float32))
    return (w1t, w2t, wfct, b, num_classes)


def _pick_b_tile(batch):
    """Batch rows per grid step.

    Big enough to amortize the ~0.35 us per-grid-step overhead, small enough
    that there are always >=2 tiles (so v7x's two TensorCores split the
    "parallel" axis).  Always a multiple of 8 (f32/bf16 sublane).
    """
    if batch <= 8:
        return 8                       # single-sample / tiny-batch latency path
    half = -(-batch // 2)              # ceil(batch / 2)  -> guarantees >= 2 tiles
    half = -(-half // 8) * 8           # round up to a multiple of 8
    return min(MAX_B_TILE, half)


def vector_neuron_classifier(x, params):
    """x: (B, input_size) or (input_size,), f32 or bf16.

    Returns (B, num_classes) logits in bf16 (upcast downstream only if f32 is
    actually required).
    """
    w1t, w2t, wfct, b, num_classes = params

    squeeze = (x.ndim == 1)
    x2d = x.reshape(1, -1) if squeeze else x
    batch, input_size = x2d.shape

    b_tile = _pick_b_tile(batch)
    num_tiles = pl.cdiv(batch, b_tile)   # ragged last block handled by Pallas

    # Advisory cost estimate so XLA can schedule neighbors around the call.
    flops = 2 * batch * (input_size * 128 + 128 * 64 + 64 * OUT_PAD)
    bytes_accessed = (
        batch * input_size * jnp.dtype(x2d.dtype).itemsize    # activation stream in
        + batch * OUT_PAD * 2                                  # bf16 logits out
        + (w1t.size + w2t.size + wfct.size) * 2 + b.size * 4)  # resident weights

    grid_spec = pl.GridSpec(
        grid=(num_tiles,),
        in_specs=[
            # Batch tile of the input marches along the grid.
            pl.BlockSpec((b_tile, input_size), lambda i: (i, 0)),
            # Weights: constant block index -> DMA'd once, stay VMEM-resident.
            pl.BlockSpec(w1t.shape, lambda i: (0, 0)),
            pl.BlockSpec(w2t.shape, lambda i: (0, 0)),
            pl.BlockSpec(wfct.shape, lambda i: (0, 0)),
            pl.BlockSpec(b.shape, lambda i: (0, 0)),
        ],
        out_specs=pl.BlockSpec((b_tile, OUT_PAD), lambda i: (i, 0)),
    )

    out = pl.pallas_call(
        _vnc_kernel,
        out_shape=jax.ShapeDtypeStruct((batch, OUT_PAD), jnp.bfloat16),
        grid_spec=grid_spec,
        cost_estimate=pl.CostEstimate(flops=flops, transcendentals=0,
                                      bytes_accessed=bytes_accessed),
        compiler_params=pltpu.CompilerParams(
            # Batch axis is embarrassingly parallel -> both TCs on v7x.
            dimension_semantics=("parallel",)),
    )(x2d, w1t, w2t, wfct, b)

    out = out[:, :num_classes]
    return out.reshape(num_classes) if squeeze else out


def init_params(key, input_size, num_classes):
    """PyTorch-layout f32 params matching the reference module's init."""
    k1, k2, k3, k4 = jax.random.split(key, 4)
    w1 = jax.random.normal(k1, (128, input_size), dtype=jnp.float32)
    w2 = jax.random.normal(k2, (64, 128), dtype=jnp.float32)
    bound = 1.0 / jnp.sqrt(64.0)
    w_fc = jax.random.uniform(k3, (num_classes, 64), dtype=jnp.float32,
                              minval=-bound, maxval=bound)
    b_fc = jax.random.uniform(k4, (num_classes,), dtype=jnp.float32,
                              minval=-bound, maxval=bound)
    return w1, w2, w_fc, b_fc


def reference_forward(x, w1, w2, w_fc, b_fc):
    """Pure-JAX reference emulating the kernel's bf16-operand / f32-accumulate path."""
    f32 = jnp.float32
    hp = jax.lax.Precision.HIGHEST
    xb = x.astype(jnp.bfloat16).astype(f32)
    w1b = w1.astype(jnp.bfloat16).astype(f32)
    w2b = w2.astype(jnp.bfloat16).astype(f32)
    wfb = w_fc.astype(jnp.bfloat16).astype(f32)
    h1 = jnp.maximum(jnp.dot(xb, w1b.T, precision=hp), 0.0)
    h1 = h1.astype(jnp.bfloat16).astype(f32)
    h2 = jnp.maximum(jnp.dot(h1, w2b.T, precision=hp), 0.0)
    h2 = h2.astype(jnp.bfloat16).astype(f32)
    return jnp.dot(h2, wfb.T, precision=hp) + b_fc


if __name__ == "__main__":
    input_size = 28 * 28          # matches the reference script
    num_classes = 10
    batch = 20                    # deliberately NOT a multiple of 8*tiles:
                                  # exercises the ragged-last-block path (no jnp.pad)

    key = jax.random.PRNGKey(0)
    k_params, k_x = jax.random.split(key)
    w1, w2, w_fc, b_fc = init_params(k_params, input_size, num_classes)
    x = jax.random.normal(k_x, (batch, input_size), dtype=jnp.float32)

    # One-time param conversion (transpose / bf16 / pad) -- not per forward call.
    params = prepare_params(w1, w2, w_fc, b_fc)

    ref = reference_forward(x, w1, w2, w_fc, b_fc)

    # f32 activation input path.
    logits = vector_neuron_classifier(x, params)
    logits = jax.block_until_ready(logits)
    assert logits.shape == (batch, num_classes), logits.shape
    assert jnp.allclose(logits.astype(jnp.float32), ref, rtol=2e-2, atol=1.0), (
        float(jnp.max(jnp.abs(logits.astype(jnp.float32) - ref))))

    # bf16 activation input path (the intended fast path -- no wrapper cast added,
    # the producer just hands over bf16 and the x DMA halves).
    logits_bf = vector_neuron_classifier(x.astype(jnp.bfloat16), params)
    logits_bf = jax.block_until_ready(logits_bf)
    assert jnp.allclose(logits_bf.astype(jnp.float32), ref, rtol=2e-2, atol=1.0)

    # Single-vector (1-D input) latency path used by the original module:
    # 8-row tile, single grid step, no padding copy.
    single = vector_neuron_classifier(x[0], params)
    single = jax.block_until_ready(single)
    assert single.shape == (num_classes,)
    assert jnp.allclose(single.astype(jnp.float32), ref[0], rtol=2e-2, atol=1.0)

    print("KERNEL_OK")
</pallas_src>

<mosaic_0001>
module attributes {stable_mosaic.version = 11 : i64} {
  func.func @_vnc_kernel(%arg0: i32, %arg1: memref<16x784xf32, #tpu.memory_space<vmem>>, %arg2: memref<784x128xbf16, #tpu.memory_space<vmem>>, %arg3: memref<128x64xbf16, #tpu.memory_space<vmem>>, %arg4: memref<64x128xbf16, #tpu.memory_space<vmem>>, %arg5: memref<1x128xf32, #tpu.memory_space<vmem>>, %arg6: memref<16x128xbf16, #tpu.memory_space<vmem>>) attributes {dimension_semantics = [#tpu.dimension_semantics<parallel>], iteration_bounds = array<i64: 2>, scalar_prefetch = 0 : i64, scratch_operands = 0 : i64, tpu.core_type = #tpu.core_type<tc>, window_params = [{transform_indices = @transform_0, window_bounds = array<i64: 16, 784>}, {pipeline_mode = #tpu.pipeline_mode<synchronous>, transform_indices = @transform_1, window_bounds = array<i64: 784, 128>}, {pipeline_mode = #tpu.pipeline_mode<synchronous>, transform_indices = @transform_2, window_bounds = array<i64: 128, 64>}, {pipeline_mode = #tpu.pipeline_mode<synchronous>, transform_indices = @transform_3, window_bounds = array<i64: 64, 128>}, {pipeline_mode = #tpu.pipeline_mode<synchronous>, transform_indices = @transform_4, window_bounds = array<i64: 1, 128>}, {transform_indices = @transform_5, window_bounds = array<i64: 16, 128>}]} {
    %c0 = arith.constant 0 : index
    %c0_0 = arith.constant 0 : index
    %0 = vector.load %arg1[%c0, %c0_0] : memref<16x784xf32, #tpu.memory_space<vmem>>, vector<16x784xf32>
    %1 = arith.truncf %0 : vector<16x784xf32> to vector<16x784xbf16>
    %c0_1 = arith.constant 0 : index
    %c0_2 = arith.constant 0 : index
    %2 = vector.load %arg2[%c0_1, %c0_2] : memref<784x128xbf16, #tpu.memory_space<vmem>>, vector<784x128xbf16>
    %cst = arith.constant dense<0.000000e+00> : vector<16x128xf32>
    %3 = tpu.matmul %1, %2, %cst {dimension_numbers = #tpu.dot_dimension_numbers<[1], [0], [0], [1], [0, 0, 1, 1], [], []>} : vector<16x784xbf16>, vector<784x128xbf16>, vector<16x128xf32> -> vector<16x128xf32>
    %cst_3 = arith.constant 0.000000e+00 : f32
    %4 = vector.broadcast %cst_3 : f32 to vector<16x128xf32>
    %5 = arith.maximumf %3, %4 : vector<16x128xf32>
    %6 = arith.truncf %5 : vector<16x128xf32> to vector<16x128xbf16>
    %c0_4 = arith.constant 0 : index
    %c0_5 = arith.constant 0 : index
    %7 = vector.load %arg3[%c0_4, %c0_5] : memref<128x64xbf16, #tpu.memory_space<vmem>>, vector<128x64xbf16>
    %cst_6 = arith.constant dense<0.000000e+00> : vector<16x64xf32>
    %8 = tpu.matmul %6, %7, %cst_6 {dimension_numbers = #tpu.dot_dimension_numbers<[1], [0], [0], [1], [0, 0, 1, 1], [], []>} : vector<16x128xbf16>, vector<128x64xbf16>, vector<16x64xf32> -> vector<16x64xf32>
    %cst_7 = arith.constant 0.000000e+00 : f32
    %9 = vector.broadcast %cst_7 : f32 to vector<16x64xf32>
    %10 = arith.maximumf %8, %9 : vector<16x64xf32>
    %11 = arith.truncf %10 : vector<16x64xf32> to vector<16x64xbf16>
    %c0_8 = arith.constant 0 : index
    %c0_9 = arith.constant 0 : index
    %12 = vector.load %arg4[%c0_8, %c0_9] : memref<64x128xbf16, #tpu.memory_space<vmem>>, vector<64x128xbf16>
    %cst_10 = arith.constant dense<0.000000e+00> : vector<16x128xf32>
    %13 = tpu.matmul %11, %12, %cst_10 {dimension_numbers = #tpu.dot_dimension_numbers<[1], [0], [0], [1], [0, 0, 1, 1], [], []>} : vector<16x64xbf16>, vector<64x128xbf16>, vector<16x128xf32> -> vector<16x128xf32>
    %c0_11 = arith.constant 0 : index
    %c0_12 = arith.constant 0 : index
    %14 = vector.load %arg5[%c0_11, %c0_12] : memref<1x128xf32, #tpu.memory_space<vmem>>, vector<1x128xf32>
    %15 = vector.broadcast %14 : vector<1x128xf32> to vector<16x128xf32>
    %16 = arith.addf %13, %15 : vector<16x128xf32>
    %17 = arith.truncf %16 : vector<16x128xf32> to vector<16x128xbf16>
    %c0_13 = arith.constant 0 : index
    %c0_14 = arith.constant 0 : index
    %18 = vector.load %arg6[%c0_13, %c0_14] : memref<16x128xbf16, #tpu.memory_space<vmem>>, vector<16x128xbf16>
    tpu.vector_store %arg6[%c0_13, %c0_14], %17 {strides = array<i32>} : memref<16x128xbf16, #tpu.memory_space<vmem>>, vector<16x128xbf16>,
    return
  }
  func.func @transform_0(%arg0: i32) -> (i32, i32) {
    %c0_i32 = arith.constant 0 : i32
    %c0_i32_0 = arith.constant 0 : i32
    return %arg0, %c0_i32 : i32, i32
  }
  func.func @transform_1(%arg0: i32) -> (i32, i32) {
    %c0_i32 = arith.constant 0 : i32
    %c0_i32_0 = arith.constant 0 : i32
    %c0_i32_1 = arith.constant 0 : i32
    return %c0_i32, %c0_i32_0 : i32, i32
  }
  func.func @transform_2(%arg0: i32) -> (i32, i32) {
    %c0_i32 = arith.constant 0 : i32
    %c0_i32_0 = arith.constant 0 : i32
    %c0_i32_1 = arith.constant 0 : i32
    return %c0_i32, %c0_i32_0 : i32, i32
  }
  func.func @transform_3(%arg0: i32) -> (i32, i32) {
    %c0_i32 = arith.constant 0 : i32
    %c0_i32_0 = arith.constant 0 : i32
    %c0_i32_1 = arith.constant 0 : i32
    return %c0_i32, %c0_i32_0 : i32, i32
  }
  func.func @transform_4(%arg0: i32) -> (i32, i32) {
    %c0_i32 = arith.constant 0 : i32
    %c0_i32_0 = arith.constant 0 : i32
    %c0_i32_1 = arith.constant 0 : i32
    return %c0_i32, %c0_i32_0 : i32, i32
  }
  func.func @transform_5(%arg0: i32) -> (i32, i32) {
    %c0_i32 = arith.constant 0 : i32
    %c0_i32_0 = arith.constant 0 : i32
    return %arg0, %c0_i32 : i32, i32
  }
}

</mosaic_0001>

<llo_original>
// kernel: tpu_custom_call.1
$region0: #{tpu_custom_call.1}
  #allocation0 [shape = 'u32[]', space=smem, size = 0x4, offset = 0x4, fixed_abs, tag = 'smem constant byte address 0x4 - core index']
  #allocation1 [shape = 'u32[144,128]{1,0:T(1,128)}', space=vmem, size = 0x12000, scoped, tag = 'internal scratch']
  %s0 = inlined_call_operand.hbm [shape: f32[20,784], index: 0, kind: input, shape index: {}]
  %s1 = inlined_call_operand.hbm [shape: bf16[784,128], index: 1, kind: input, shape index: {}]
  %s2 = inlined_call_operand.vmem [shape: bf16[128,64], index: 2, kind: input, shape index: {}]
  %s3 = inlined_call_operand.vmem [shape: bf16[64,128], index: 3, kind: input, shape index: {}]
  %s4 = inlined_call_operand.vmem [shape: f32[1,128], index: 4, kind: input, shape index: {}]
  %s5 = inlined_call_operand.hbm [shape: bf16[20,128], index: 5, kind: output, shape index: {}]
  %s6 = sld [smem:[#allocation0]]
  $region61: #{tpu_custom_call.1} parent=0
    _
  %s8 = ssub.s32 1, %s6
  %s9 = scalar_select 0, %s8, %s6
  $region1: #{tpu_custom_call.1} parent=0
    #allocation2 [shape = 'u8[114688]{0}', space=vmem, size = 0x1c000, scoped, tag = 'input window, operand 0']
    #allocation3 [shape = 's32[2]{0}', space=sflag, size = 0x8, scoped, tag = 'scoped memory for tpu_custom_call.1']
    #allocation4 [shape = 's32[2]{0}', space=sflag, size = 0x8, scoped, tag = 'scoped memory for tpu_custom_call.1']
    #allocation5 [shape = 'u8[200704]{0}', space=vmem, size = 0x31000, scoped, tag = 'input window, operand 1, single buffered']
    #allocation6 [shape = 's32[1]{0}', space=sflag, size = 0x4, scoped, tag = 'scoped memory for tpu_custom_call.1']
    #allocation7 [shape = 'u8[8192]{0}', space=vmem, size = 0x2000, scoped, tag = 'output window, operand 0']
    %10 = vsyncpa [#allocation3], 0
    %s11 = scalar_lea.sflag [#allocation3], 1
    %12 = vsyncpa %s11, 0
    %13 = vsyncpa [#allocation6], 0
    %14 = vsyncpa [#allocation4], 0
    %s15 = scalar_lea.sflag [#allocation4], 1
    %16 = vsyncpa %s15, 0
    loop: start=0, step=1, limit=4
    $region2: #{tpu_custom_call.1} parent=1 // loop_pre_header
      _
    $region3: #{tpu_custom_call.1} parent=1 // loop_header
      %s18 = sphi 0, %s22
      %p19 = scmp.ge.s32.totalorder %s18, 4
      %s28 = sphi 0, %s30
      %s31 = sphi 0, %s28
      %s32 = sphi 0, %s31
      %s48 = sphi 0, %s32
      %s52 = sphi 0, %s52
      %s54 = sphi 0, %s52
      %s55 = sphi 0, %s54
      %s69 = sphi 0, %s55
      %s73 = sphi 0, %s73
      %s75 = sphi 0, %s73
      %s76 = sphi 0, %s75
      %s90 = sphi 0, %s76
      %s94 = sphi 0, %s94
      %s96 = sphi 0, %s94
      %s97 = sphi 0, %s96
      %s111 = sphi 0, %s97
      %s115 = sphi 0, %s115
      %s117 = sphi 0, %s115
      %s118 = sphi 0, %s117
      %s132 = sphi 0, %s118
      %s138 = sphi 0, %s140
      %s141 = sphi 0, %s138
      %s142 = sphi 0, %s141
      %s158 = sphi 0, %s142
    $region4: #{tpu_custom_call.1} parent=1 // loop_header_branch
      %21 = sbr.rel (%p19) target = $region8
    $region5: #{tpu_custom_call.1} parent=1 // loop_body
      %s23 = ssub.s32 %s18, 1
      %s24 = ssub.s32 %s18, 2
      %s25 = sadd.s32 %s18, 1
      %s26 = ssub.s32 %s18, %s25
      %p27 = scmp.eq.s32.totalorder %s26, 0
      %s29 = sadd.s32 %s28, 1
      %s30 = scalar_select %p27, %s28, %s29
      %p33 = pneg %p27
      %p34 = scmp.eq.s32.totalorder %s18, 1
      %p35 = por %p33, %p34
      %p36 = scmp.ne.s32.totalorder %s28, %s31
      %p37 = scmp.eq.s32.totalorder %s18, 0
      %p38 = por %p36, %p37
      %p39 = scmp.ne.s32.totalorder %s28, %s31
      %p40 = scmp.eq.s32.totalorder %s23, 1
      %p41 = por %p39, %p40
      %p42 = scmp.ne.s32.totalorder %s31, %s32
      %p43 = scmp.eq.s32.totalorder %s23, 0
      %p44 = por %p42, %p43
      %p45 = scmp.ne.s32.totalorder %s31, %s32
      %p46 = scmp.eq.s32.totalorder %s24, 1
      %p47 = por %p45, %p46
      %p49 = scmp.ne.s32.totalorder %s32, %s48
      %p50 = scmp.eq.s32.totalorder %s24, 0
      %p51 = por %p49, %p50
      %s53 = sadd.s32 %s52, 1
      %p56 = scmp.eq.s32.totalorder %s18, 1
      %p57 = scmp.ne.s32.totalorder %s52, %s54
      %p58 = scmp.eq.s32.totalorder %s18, 0
      %p59 = por %p57, %p58
      %p60 = scmp.ne.s32.totalorder %s52, %s54
      %p61 = scmp.eq.s32.totalorder %s23, 1
      %p62 = por %p60, %p61
      %p63 = scmp.ne.s32.totalorder %s54, %s55
      %p64 = scmp.eq.s32.totalorder %s23, 0
      %p65 = por %p63, %p64
      %p66 = scmp.ne.s32.totalorder %s54, %s55
      %p67 = scmp.eq.s32.totalorder %s24, 1
      %p68 = por %p66, %p67
      %p70 = scmp.ne.s32.totalorder %s55, %s69
      %p71 = scmp.eq.s32.totalorder %s24, 0
      %p72 = por %p70, %p71
      %s74 = sadd.s32 %s73, 1
      %p77 = scmp.eq.s32.totalorder %s18, 1
      %p78 = scmp.ne.s32.totalorder %s73, %s75
      %p79 = scmp.eq.s32.totalorder %s18, 0
      %p80 = por %p78, %p79
      %p81 = scmp.ne.s32.totalorder %s73, %s75
      %p82 = scmp.eq.s32.totalorder %s23, 1
      %p83 = por %p81, %p82
      %p84 = scmp.ne.s32.totalorder %s75, %s76
      %p85 = scmp.eq.s32.totalorder %s23, 0
      %p86 = por %p84, %p85
      %p87 = scmp.ne.s32.totalorder %s75, %s76
      %p88 = scmp.eq.s32.totalorder %s24, 1
      %p89 = por %p87, %p88
      %p91 = scmp.ne.s32.totalorder %s76, %s90
      %p92 = scmp.eq.s32.totalorder %s24, 0
      %p93 = por %p91, %p92
      %s95 = sadd.s32 %s94, 1
      %p98 = scmp.eq.s32.totalorder %s18, 1
      %p99 = scmp.ne.s32.totalorder %s94, %s96
      %p100 = scmp.eq.s32.totalorder %s18, 0
      %p101 = por %p99, %p100
      %p102 = scmp.ne.s32.totalorder %s94, %s96
      %p103 = scmp.eq.s32.totalorder %s23, 1
      %p104 = por %p102, %p103
      %p105 = scmp.ne.s32.totalorder %s96, %s97
      %p106 = scmp.eq.s32.totalorder %s23, 0
      %p107 = por %p105, %p106
      %p108 = scmp.ne.s32.totalorder %s96, %s97
      %p109 = scmp.eq.s32.totalorder %s24, 1
      %p110 = por %p108, %p109
      %p112 = scmp.ne.s32.totalorder %s97, %s111
      %p113 = scmp.eq.s32.totalorder %s24, 0
      %p114 = por %p112, %p113
      %s116 = sadd.s32 %s115, 1
      %p119 = scmp.eq.s32.totalorder %s18, 1
      %p120 = scmp.ne.s32.totalorder %s115, %s117
      %p121 = scmp.eq.s32.totalorder %s18, 0
      %p122 = por %p120, %p121
      %p123 = scmp.ne.s32.totalorder %s115, %s117
      %p124 = scmp.eq.s32.totalorder %s23, 1
      %p125 = por %p123, %p124
      %p126 = scmp.ne.s32.totalorder %s117, %s118
      %p127 = scmp.eq.s32.totalorder %s23, 0
      %p128 = por %p126, %p127
      %p129 = scmp.ne.s32.totalorder %s117, %s118
      %p130 = scmp.eq.s32.totalorder %s24, 1
      %p131 = por %p129, %p130
      %p133 = scmp.ne.s32.totalorder %s118, %s132
      %p134 = scmp.eq.s32.totalorder %s24, 0
      %p135 = por %p133, %p134
      %s136 = ssub.s32 %s18, %s25
      %p137 = scmp.eq.s32.totalorder %s136, 0
      %s139 = sadd.s32 %s138, 1
      %s140 = scalar_select %p137, %s138, %s139
      %p143 = pneg %p137
      %p144 = scmp.eq.s32.totalorder %s18, 1
      %p145 = por %p143, %p144
      %p146 = scmp.ne.s32.totalorder %s138, %s141
      %p147 = scmp.eq.s32.totalorder %s18, 0
      %p148 = por %p146, %p147
      %p149 = scmp.ne.s32.totalorder %s138, %s141
      %p150 = scmp.eq.s32.totalorder %s23, 1
      %p151 = por %p149, %p150
      %p152 = scmp.ne.s32.totalorder %s141, %s142
      %p153 = scmp.eq.s32.totalorder %s23, 0
      %p154 = por %p152, %p153
      %p155 = scmp.ne.s32.totalorder %s141, %s142
      %p156 = scmp.eq.s32.totalorder %s24, 1
      %p157 = por %p155, %p156
      %p159 = scmp.ne.s32.totalorder %s142, %s158
      %p160 = scmp.eq.s32.totalorder %s24, 0
      %p161 = por %p159, %p160
      %p162 = scmp.le.s32.totalorder 1, %s18
      %p163 = scmp.lt.s32.totalorder %s18, 3
      %p164 = pnand %p162, %p163
      %p165 = pneg %p164
      // Predicated region
      $region9: #{tpu_custom_call.1} parent=5 // pred_check
        _
      $region10: #{tpu_custom_call.1} parent=5 // pred_check_branch
        %167 = sbr.rel (%p164) target = $region12
      $region11: #{tpu_custom_call.1} parent=5 // pred_region
        %s168 = ssub.s32 %s18, 1
        // Predicated region
        $region13: #{tpu_custom_call.1} parent=11 // pred_check
          %p169 = pneg %p65
        $region14: #{tpu_custom_call.1} parent=11 // pred_check_branch
          %171 = sbr.rel (%p169) target = $region16
        $region15: #{tpu_custom_call.1} parent=11 // pred_region
          %s173 = ssub.s32 6272, 6272
          %174 = vsyncadd [#allocation6], %s173
          %s175 = sshll.u32 [#allocation5], 4
          %s176 = int_to_ptr.vmem [resolvable:$true] %s175
          %181 = dma.hbm_to_vmem [thread:$0]  %s1, 6272, %s176, [#allocation6], 64, 64, 4
        $region16: #{tpu_custom_call.1} parent=11 // pred_fallthru
          _
        // Predicated region
        $region17: #{tpu_custom_call.1} parent=11 // pred_check
          %p182 = pneg %p86
        $region18: #{tpu_custom_call.1} parent=11 // pred_check_branch
          %184 = sbr.rel (%p182) target = $region20
        $region19: #{tpu_custom_call.1} parent=11 // pred_region
          _
        $region20: #{tpu_custom_call.1} parent=11 // pred_fallthru
          _
        // Predicated region
        $region21: #{tpu_custom_call.1} parent=11 // pred_check
          %p185 = pneg %p107
        $region22: #{tpu_custom_call.1} parent=11 // pred_check_branch
          %187 = sbr.rel (%p185) target = $region24
        $region23: #{tpu_custom_call.1} parent=11 // pred_region
          _
        $region24: #{tpu_custom_call.1} parent=11 // pred_fallthru
          _
        // Predicated region
        $region25: #{tpu_custom_call.1} parent=11 // pred_check
          %p188 = pneg %p128
        $region26: #{tpu_custom_call.1} parent=11 // pred_check_branch
          %190 = sbr.rel (%p188) target = $region28
        $region27: #{tpu_custom_call.1} parent=11 // pred_region
          _
        $region28: #{tpu_custom_call.1} parent=11 // pred_fallthru
          _
      $region12: #{tpu_custom_call.1} parent=5 // pred_fallthru
        _
      %p191 = scmp.lt.s32.totalorder %s18, 2
      // Predicated region
      $region29: #{tpu_custom_call.1} parent=5 // pred_check
        %p192 = pneg %p191
      $region30: #{tpu_custom_call.1} parent=5 // pred_check_branch
        %194 = sbr.rel (%p192) target = $region32
      $region31: #{tpu_custom_call.1} parent=5 // pred_region
        // Predicated region
        $region33: #{tpu_custom_call.1} parent=31 // pred_check
          %p195 = pneg %p38
        $region34: #{tpu_custom_call.1} parent=31 // pred_check_branch
          %197 = sbr.rel (%p195) target = $region36
        $region35: #{tpu_custom_call.1} parent=31 // pred_region
          %s198 = sand.u32 %s28, 1
          %s199 = scalar_lea.sflag [#allocation3], %s198
          %s200 = sand.u32 %s28, 1
          %s201 = smul.addr %s200, 112
          %s202 = scalar_lea.vmem [#allocation2], %s201
          %s203 = smul.u32 2, %s18
          %s204 = ssub.s32 3, %s203
          %p205 = scmp.lt.s32.totalorder %s204, 2
          %s206 = scalar_select %p205, %s204, 2
          %s207 = smul.u32 128, %s206
          %s208 = smul.u32 %s207, 7
          %s210 = ssub.s32 1792, %s208
          %211 = vsyncadd %s199, %s210
          %p212 = scmp.ne.s32.totalorder 0, %s208
          %s213 = smul.addr %s203, 7
          %s214 = smul.addr %s213, 128
          %s215 = scalar_lea.hbm %s0, %s214
          %s216 = smul.u32 56, %s206
          %s217 = sshll.u32 %s202, 4
          %s218 = int_to_ptr.vmem [resolvable:$true] %s217
          %s219 = sshll.u32 %s216, 4
          %223 = dma.hbm_to_vmem [thread:$0]  (%p212), %s215, %s219, %s218, %s199, 896, 896, 56
        $region36: #{tpu_custom_call.1} parent=31 // pred_fallthru
          _
      $region32: #{tpu_custom_call.1} parent=5 // pred_fallthru
        _
      %p224 = scmp.le.s32.totalorder 1, %s18
      %p225 = scmp.lt.s32.totalorder %s18, 3
      %p226 = pnand %p224, %p225
      %p227 = pneg %p226
      // Predicated region
      $region37: #{tpu_custom_call.1} parent=5 // pred_check
        _
      $region38: #{tpu_custom_call.1} parent=5 // pred_check_branch
        %229 = sbr.rel (%p226) target = $region40
      $region39: #{tpu_custom_call.1} parent=5 // pred_region
        %s230 = ssub.s32 %s18, 1
        %s231 = sand.u32 %s31, 1
        %s232 = scalar_lea.sflag [#allocation3], %s231
        %s233 = sand.u32 %s31, 1
        %s234 = smul.addr %s233, 112
        %s235 = scalar_lea.vmem [#allocation2], %s234
        // Predicated region
        $region41: #{tpu_custom_call.1} parent=39 // pred_check
          %p236 = pneg %p44
        $region42: #{tpu_custom_call.1} parent=39 // pred_check_branch
          %238 = sbr.rel (%p236) target = $region44
        $region43: #{tpu_custom_call.1} parent=39 // pred_region
          %239 = dma.done %s232, 1792
        $region44: #{tpu_custom_call.1} parent=39 // pred_fallthru
          _
        // Predicated region
        $region45: #{tpu_custom_call.1} parent=39 // pred_check
          %p240 = pneg %p65
        $region46: #{tpu_custom_call.1} parent=39 // pred_check_branch
          %242 = sbr.rel (%p240) target = $region48
        $region47: #{tpu_custom_call.1} parent=39 // pred_region
          %243 = dma.done [#allocation6], 6272
        $region48: #{tpu_custom_call.1} parent=39 // pred_fallthru
          _
        %s244 = sand.u32 %s31, 1
        %s245 = scalar_lea.sflag [#allocation3], %s244
        %s246 = sand.u32 %s31, 1
        %s247 = smul.addr %s246, 112
        %s248 = scalar_lea.vmem [#allocation2], %s247
        %p249 = pneg %p44
        %p250 = pneg %p41
        %p251 = pneg %p65
        %p252 = pneg %p62
        %p253 = pneg %p86
        %p254 = pneg %p83
        %p255 = pneg %p107
        %p256 = pneg %p104
        %p257 = pneg %p128
        %p258 = pneg %p125
        %p259 = pneg %p154
        %p260 = pneg %p151
        %s261 = sand.u32 %s141, 1
        %s262 = scalar_lea.sflag [#allocation4], %s261
        %s263 = sand.u32 %s141, 1
        %s264 = smul.addr %s263, 8
        %s265 = scalar_lea.vmem [#allocation7], %s264
        %s266 = smul.u32 2, %s23
        %s267 = ssub.s32 3, %s266
        %p268 = scmp.lt.s32.totalorder %s267, 2
        %s269 = scalar_select %p268, %s267, 2
        %s270 = smul.u32 128, %s269
        %s271 = smul.u32 %s270, 7
        %s272 = smul.u32 2, %s23
        %s273 = ssub.s32 3, %s272
        %p274 = scmp.lt.s32.totalorder %s273, 2
        %s275 = scalar_select %p274, %s273, 2
        %s276 = smul.u32 64, %s275
        %v278 = vld [vmem:[%s235] sm:$0xff]
        %v279 = vld [vmem:[%s235 + $0x8] sm:$0xff]
        %v280 = vld [vmem:[%s235 + $0x10] sm:$0xff]
        %v281 = vld [vmem:[%s235 + $0x18] sm:$0xff]
        %v282 = vld [vmem:[%s235 + $0x20] sm:$0xff]
        %v283 = vld [vmem:[%s235 + $0x28] sm:$0xff]
        %v284 = vld [vmem:[%s235 + $0x30] sm:$0xff]
        %v285 = vld [vmem:[%s235 + $0x38] sm:$0xff]
        %v286 = vld [vmem:[%s235 + $0x40] sm:$0xff]
        %v287 = vld [vmem:[%s235 + $0x48] sm:$0xff]
        %v288 = vld [vmem:[%s235 + $0x50] sm:$0xff]
        %v289 = vld [vmem:[%s235 + $0x58] sm:$0xff]
        %v290 = vld [vmem:[%s235 + $0x60] sm:$0xff]
        %v291 = vld [vmem:[%s235 + $0x68] sm:$0xff]
        %v292 = vpack.c.bf16 %v285, %v278
        %v293 = vpack.c.bf16 %v286, %v279
        %v294 = vpack.c.bf16 %v287, %v280
        %v295 = vpack.c.bf16 %v288, %v281
        %v296 = vpack.c.bf16 %v289, %v282
        %v297 = vpack.c.bf16 %v290, %v283
        %v298 = vpack.c.bf16 %v291, %v284
        %v299 = vld [vmem:[#allocation5] sm:$0xf]
        %v300 = vld [vmem:[#allocation5 + $0x4] sm:$0xf]
        %v301 = vld [vmem:[#allocation5 + $0x8] sm:$0xf]
        %v302 = vld [vmem:[#allocation5 + $0xc] sm:$0xf]
        %v303 = vld [vmem:[#allocation5 + $0x10] sm:$0xf]
        %v304 = vld [vmem:[#allocation5 + $0x14] sm:$0xf]
        %v305 = vld [vmem:[#allocation5 + $0x18] sm:$0xf]
        %v306 = vld [vmem:[#allocation5 + $0x1c] sm:$0xf]
        %v307 = vld [vmem:[#allocation5 + $0x20] sm:$0xf]
        %v308 = vld [vmem:[#allocation5 + $0x24] sm:$0xf]
        %v309 = vld [vmem:[#allocation5 + $0x28] sm:$0xf]
        %v310 = vld [vmem:[#allocation5 + $0x2c] sm:$0xf]
        %v311 = vld [vmem:[#allocation5 + $0x30] sm:$0xf]
        %v312 = vld [vmem:[#allocation5 + $0x34] sm:$0xf]
        %v313 = vld [vmem:[#allocation5 + $0x38] sm:$0xf]
        %v314 = vld [vmem:[#allocation5 + $0x3c] sm:$0xf]
        %v315 = vld [vmem:[#allocation5 + $0x40] sm:$0xf]
        %v316 = vld [vmem:[#allocation5 + $0x44] sm:$0xf]
        %v317 = vld [vmem:[#allocation5 + $0x48] sm:$0xf]
        %v318 = vld [vmem:[#allocation5 + $0x4c] sm:$0xf]
        %v319 = vld [vmem:[#allocation5 + $0x50] sm:$0xf]
        %v320 = vld [vmem:[#allocation5 + $0x54] sm:$0xf]
        %v321 = vld [vmem:[#allocation5 + $0x58] sm:$0xf]
        %v322 = vld [vmem:[#allocation5 + $0x5c] sm:$0xf]
        %v323 = vld [vmem:[#allocation5 + $0x60] sm:$0xf]
        %v324 = vld [vmem:[#allocation5 + $0x64] sm:$0xf]
        %v325 = vld [vmem:[#allocation5 + $0x68] sm:$0xf]
        %v326 = vld [vmem:[#allocation5 + $0x6c] sm:$0xf]
        %v327 = vld [vmem:[#allocation5 + $0x70] sm:$0xf]
        %v328 = vld [vmem:[#allocation5 + $0x74] sm:$0xf]
        %v329 = vld [vmem:[#allocation5 + $0x78] sm:$0xf]
        %v330 = vld [vmem:[#allocation5 + $0x7c] sm:$0xf]
        %v331 = vld [vmem:[#allocation5 + $0x80] sm:$0xf]
        %v332 = vld [vmem:[#allocation5 + $0x84] sm:$0xf]
        %v333 = vld [vmem:[#allocation5 + $0x88] sm:$0xf]
        %v334 = vld [vmem:[#allocation5 + $0x8c] sm:$0xf]
        %v335 = vld [vmem:[#allocation5 + $0x90] sm:$0xf]
        %v336 = vld [vmem:[#allocation5 + $0x94] sm:$0xf]
        %v337 = vld [vmem:[#allocation5 + $0x98] sm:$0xf]
        %v338 = vld [vmem:[#allocation5 + $0x9c] sm:$0xf]
        %v339 = vld [vmem:[#allocation5 + $0xa0] sm:$0xf]
        %v340 = vld [vmem:[#allocation5 + $0xa4] sm:$0xf]
        %v341 = vld [vmem:[#allocation5 + $0xa8] sm:$0xf]
        %v342 = vld [vmem:[#allocation5 + $0xac] sm:$0xf]
        %v343 = vld [vmem:[#allocation5 + $0xb0] sm:$0xf]
        %v344 = vld [vmem:[#allocation5 + $0xb4] sm:$0xf]
        %v345 = vld [vmem:[#allocation5 + $0xb8] sm:$0xf]
        %v346 = vld [vmem:[#allocation5 + $0xbc] sm:$0xf]
        %v347 = vld [vmem:[#allocation5 + $0xc0] sm:$0xf]
        %v348 = vld [vmem:[#allocation5 + $0xc4] sm:$0xf]
        %v349 = vld [vmem:[#allocation5 + $0xc8] sm:$0xf]
        %v350 = vld [vmem:[#allocation5 + $0xcc] sm:$0xf]
        %v351 = vld [vmem:[#allocation5 + $0xd0] sm:$0xf]
        %v352 = vld [vmem:[#allocation5 + $0xd4] sm:$0xf]
        %v353 = vld [vmem:[#allocation5 + $0xd8] sm:$0xf]
        %v354 = vld [vmem:[#allocation5 + $0xdc] sm:$0xf]
        %v355 = vld [vmem:[#allocation5 + $0xe0] sm:$0xf]
        %v356 = vld [vmem:[#allocation5 + $0xe4] sm:$0xf]
        %v357 = vld [vmem:[#allocation5 + $0xe8] sm:$0xf]
        %v358 = vld [vmem:[#allocation5 + $0xec] sm:$0xf]
        %v359 = vld [vmem:[#allocation5 + $0xf0] sm:$0xf]
        %v360 = vld [vmem:[#allocation5 + $0xf4] sm:$0xf]
        %v361 = vld [vmem:[#allocation5 + $0xf8] sm:$0xf]
        %v362 = vld [vmem:[#allocation5 + $0xfc] sm:$0xf]
        %v363 = vld [vmem:[#allocation5 + $0x100] sm:$0xf]
        %v364 = vld [vmem:[#allocation5 + $0x104] sm:$0xf]
        %v365 = vld [vmem:[#allocation5 + $0x108] sm:$0xf]
        %v366 = vld [vmem:[#allocation5 + $0x10c] sm:$0xf]
        %v367 = vld [vmem:[#allocation5 + $0x110] sm:$0xf]
        %v368 = vld [vmem:[#allocation5 + $0x114] sm:$0xf]
        %v369 = vld [vmem:[#allocation5 + $0x118] sm:$0xf]
        %v370 = vld [vmem:[#allocation5 + $0x11c] sm:$0xf]
        %v371 = vld [vmem:[#allocation5 + $0x120] sm:$0xf]
        %v372 = vld [vmem:[#allocation5 + $0x124] sm:$0xf]
        %v373 = vld [vmem:[#allocation5 + $0x128] sm:$0xf]
        %v374 = vld [vmem:[#allocation5 + $0x12c] sm:$0xf]
        %v375 = vld [vmem:[#allocation5 + $0x130] sm:$0xf]
        %v376 = vld [vmem:[#allocation5 + $0x134] sm:$0xf]
        %v377 = vld [vmem:[#allocation5 + $0x138] sm:$0xf]
        %v378 = vld [vmem:[#allocation5 + $0x13c] sm:$0xf]
        %v379 = vld [vmem:[#allocation5 + $0x140] sm:$0xf]
        %v380 = vld [vmem:[#allocation5 + $0x144] sm:$0xf]
        %v381 = vld [vmem:[#allocation5 + $0x148] sm:$0xf]
        %v382 = vld [vmem:[#allocation5 + $0x14c] sm:$0xf]
        %v383 = vld [vmem:[#allocation5 + $0x150] sm:$0xf]
        %v384 = vld [vmem:[#allocation5 + $0x154] sm:$0xf]
        %v385 = vld [vmem:[#allocation5 + $0x158] sm:$0xf]
        %v386 = vld [vmem:[#allocation5 + $0x15c] sm:$0xf]
        %v387 = vld [vmem:[#allocation5 + $0x160] sm:$0xf]
        %v388 = vld [vmem:[#allocation5 + $0x164] sm:$0xf]
        %v389 = vld [vmem:[#allocation5 + $0x168] sm:$0xf]
        %v390 = vld [vmem:[#allocation5 + $0x16c] sm:$0xf]
        %v391 = vld [vmem:[#allocation5 + $0x170] sm:$0xf]
        %v392 = vld [vmem:[#allocation5 + $0x174] sm:$0xf]
        %v393 = vld [vmem:[#allocation5 + $0x178] sm:$0xf]
        %v394 = vld [vmem:[#allocation5 + $0x17c] sm:$0xf]
        %v395 = vld [vmem:[#allocation5 + $0x180] sm:$0xf]
        %v396 = vld [vmem:[#allocation5 + $0x184] sm:$0xf]
        %v495 = vunpack.c.l.b16 %v299
        %v496 = vunpack.c.l.b16 %v300
        %v497 = vunpack.c.l.b16 %v301
        %v498 = vunpack.c.l.b16 %v302
        %v499 = vunpack.c.l.b16 %v303
        %v500 = vunpack.c.l.b16 %v304
        %v501 = vunpack.c.l.b16 %v305
        %v502 = vunpack.c.l.b16 %v306
        %v503 = vunpack.c.l.b16 %v307
        %v504 = vunpack.c.l.b16 %v308
        %v505 = vunpack.c.l.b16 %v309
        %v506 = vunpack.c.l.b16 %v310
        %v507 = vunpack.c.l.b16 %v311
        %v508 = vunpack.c.l.b16 %v312
        %v509 = vunpack.c.l.b16 %v313
        %v510 = vunpack.c.l.b16 %v314
        %v511 = vunpack.c.l.b16 %v315
        %v512 = vunpack.c.l.b16 %v316
        %v513 = vunpack.c.l.b16 %v317
        %v514 = vunpack.c.l.b16 %v318
        %v515 = vunpack.c.l.b16 %v319
        %v516 = vunpack.c.l.b16 %v320
        %v517 = vunpack.c.l.b16 %v321
        %v518 = vunpack.c.l.b16 %v322
        %v519 = vunpack.c.l.b16 %v323
        %v520 = vunpack.c.l.b16 %v324
        %v521 = vunpack.c.l.b16 %v325
        %v522 = vunpack.c.l.b16 %v326
        %v523 = vunpack.c.l.b16 %v327
        %v524 = vunpack.c.l.b16 %v328
        %v525 = vunpack.c.l.b16 %v329
        %v526 = vunpack.c.l.b16 %v330
        %v527 = vunpack.c.l.b16 %v331
        %v528 = vunpack.c.l.b16 %v332
        %v529 = vunpack.c.l.b16 %v333
        %v530 = vunpack.c.l.b16 %v334
        %v531 = vunpack.c.l.b16 %v335
        %v532 = vunpack.c.l.b16 %v336
        %v533 = vunpack.c.l.b16 %v337
        %v534 = vunpack.c.l.b16 %v338
        %v535 = vunpack.c.l.b16 %v339
        %v536 = vunpack.c.l.b16 %v340
        %v537 = vunpack.c.l.b16 %v341
        %v538 = vunpack.c.l.b16 %v342
        %v539 = vunpack.c.l.b16 %v343
        %v540 = vunpack.c.l.b16 %v344
        %v541 = vunpack.c.l.b16 %v345
        %v542 = vunpack.c.l.b16 %v346
        %v543 = vunpack.c.l.b16 %v347
        %v544 = vunpack.c.l.b16 %v348
        %v545 = vunpack.c.l.b16 %v349
        %v546 = vunpack.c.l.b16 %v350
        %v547 = vunpack.c.l.b16 %v351
        %v548 = vunpack.c.l.b16 %v352
        %v549 = vunpack.c.l.b16 %v353
        %v550 = vunpack.c.l.b16 %v354
        %v551 = vunpack.c.l.b16 %v355
        %v552 = vunpack.c.l.b16 %v356
        %v553 = vunpack.c.l.b16 %v357
        %v554 = vunpack.c.l.b16 %v358
        %v555 = vunpack.c.l.b16 %v359
        %v556 = vunpack.c.l.b16 %v360
        %v557 = vunpack.c.l.b16 %v361
        %v558 = vunpack.c.l.b16 %v362
        %v559 = vunpack.c.l.b16 %v363
        %v560 = vunpack.c.l.b16 %v364
        %v561 = vunpack.c.l.b16 %v365
        %v562 = vunpack.c.l.b16 %v366
        %v563 = vunpack.c.l.b16 %v367
        %v564 = vunpack.c.l.b16 %v368
        %v565 = vunpack.c.l.b16 %v369
        %v566 = vunpack.c.l.b16 %v370
        %v567 = vunpack.c.l.b16 %v371
        %v568 = vunpack.c.l.b16 %v372
        %v569 = vunpack.c.l.b16 %v373
        %v570 = vunpack.c.l.b16 %v374
        %v571 = vunpack.c.l.b16 %v375
        %v572 = vunpack.c.l.b16 %v376
        %v573 = vunpack.c.l.b16 %v377
        %v574 = vunpack.c.l.b16 %v378
        %v575 = vunpack.c.l.b16 %v379
        %v576 = vunpack.c.l.b16 %v380
        %v577 = vunpack.c.l.b16 %v381
        %v578 = vunpack.c.l.b16 %v382
        %v579 = vunpack.c.l.b16 %v383
        %v580 = vunpack.c.l.b16 %v384
        %v581 = vunpack.c.l.b16 %v385
        %v582 = vunpack.c.l.b16 %v386
        %v583 = vunpack.c.l.b16 %v387
        %v584 = vunpack.c.l.b16 %v388
        %v585 = vunpack.c.l.b16 %v389
        %v586 = vunpack.c.l.b16 %v390
        %v587 = vunpack.c.l.b16 %v391
        %v588 = vunpack.c.l.b16 %v392
        %v589 = vunpack.c.l.b16 %v393
        %v590 = vunpack.c.l.b16 %v394
        %v591 = vunpack.c.l.b16 %v395
        %v592 = vunpack.c.l.b16 %v396
        %v593 = vpack.c.b16 %v496, %v495
        %v594 = vpack.c.b16 %v498, %v497
        %v595 = vpack.c.b16 %v500, %v499
        %v596 = vpack.c.b16 %v502, %v501
        %v597 = vpack.c.b16 %v504, %v503
        %v598 = vpack.c.b16 %v506, %v505
        %v599 = vpack.c.b16 %v508, %v507
        %v600 = vpack.c.b16 %v510, %v509
        %v601 = vpack.c.b16 %v512, %v511
        %v602 = vpack.c.b16 %v514, %v513
        %v603 = vpack.c.b16 %v516, %v515
        %v604 = vpack.c.b16 %v518, %v517
        %v605 = vpack.c.b16 %v520, %v519
        %v606 = vpack.c.b16 %v522, %v521
        %v607 = vpack.c.b16 %v524, %v523
        %v608 = vpack.c.b16 %v526, %v525
        %v609 = vpack.c.b16 %v528, %v527
        %v610 = vpack.c.b16 %v530, %v529
        %v611 = vpack.c.b16 %v532, %v531
        %v612 = vpack.c.b16 %v534, %v533
        %v613 = vpack.c.b16 %v536, %v535
        %v614 = vpack.c.b16 %v538, %v537
        %v615 = vpack.c.b16 %v540, %v539
        %v616 = vpack.c.b16 %v542, %v541
        %v617 = vpack.c.b16 %v544, %v543
        %v618 = vpack.c.b16 %v546, %v545
        %v619 = vpack.c.b16 %v548, %v547
        %v620 = vpack.c.b16 %v550, %v549
        %v621 = vpack.c.b16 %v552, %v551
        %v622 = vpack.c.b16 %v554, %v553
        %v623 = vpack.c.b16 %v556, %v555
        %v624 = vpack.c.b16 %v558, %v557
        %v625 = vpack.c.b16 %v560, %v559
        %v626 = vpack.c.b16 %v562, %v561
        %v627 = vpack.c.b16 %v564, %v563
        %v628 = vpack.c.b16 %v566, %v565
        %v629 = vpack.c.b16 %v568, %v567
        %v630 = vpack.c.b16 %v570, %v569
        %v631 = vpack.c.b16 %v572, %v571
        %v632 = vpack.c.b16 %v574, %v573
        %v633 = vpack.c.b16 %v576, %v575
        %v634 = vpack.c.b16 %v578, %v577
        %v635 = vpack.c.b16 %v580, %v579
        %v636 = vpack.c.b16 %v582, %v581
        %v637 = vpack.c.b16 %v584, %v583
        %v638 = vpack.c.b16 %v586, %v585
        %v639 = vpack.c.b16 %v588, %v587
        %v640 = vpack.c.b16 %v590, %v589
        %v641 = vpack.c.b16 %v592, %v591
        %vm691 = vcmask 130048
        %v693 = vsel %vm691, %v298, 0
        %695 = vmatprep.subr.bf16.mxu0 0
        %696 = vmatpush1.bf16.msra.mxu0 %v593
        %697 = vmatprep.subr.bf16.mxu0 0
        %698 = vmatpush1.bf16.msra.mxu0 %v594
        %699 = vmatprep.subr.bf16.mxu0 0
        %700 = vmatpush1.bf16.msra.mxu0 %v595
        %701 = vmatprep.subr.bf16.mxu0 0
        %702 = vmatpush1.bf16.msra.mxu0 %v596
        %703 = vmatprep.subr.bf16.mxu0 0
        %704 = vmatpush1.bf16.msra.mxu0 %v597
        %705 = vmatprep.subr.bf16.mxu0 0
        %706 = vmatpush1.bf16.msra.mxu0 %v598
        %707 = vmatprep.subr.bf16.mxu0 0
        %708 = vmatpush1.bf16.msra.mxu0 %v599
        %709 = vmatprep.subr.bf16.mxu0 0
        %710 = vmatpush1.bf16.msra.mxu0 %v600
        %711 = vmatprep.subr.bf16.mxu0 0
        %712 = vmatpush1.bf16.msra.mxu0 %v601
        %713 = vmatprep.subr.bf16.mxu0 0
        %714 = vmatpush1.bf16.msra.mxu0 %v602
        %715 = vmatprep.subr.bf16.mxu0 0
        %716 = vmatpush1.bf16.msra.mxu0 %v603
        %717 = vmatprep.subr.bf16.mxu0 0
        %718 = vmatpush1.bf16.msra.mxu0 %v604
        %719 = vmatprep.subr.bf16.mxu0 0
        %720 = vmatpush1.bf16.msra.mxu0 %v605
        %721 = vmatprep.subr.bf16.mxu0 0
        %722 = vmatpush1.bf16.msra.mxu0 %v606
        %723 = vmatprep.subr.bf16.mxu0 0
        %724 = vmatpush1.bf16.msra.mxu0 %v607
        %725 = vmatprep.subr.bf16.mxu0 0
        %726 = vmatpush1.bf16.msra.mxu0 %v608
        %727 = vmatprep.mubr.bf16.mxu0 %v293
        %728 = vmatmul.mubr.bf16.gmra.mrb[0].mxu0 %v292
        %v729 = vpop.f32.mrb[0].mxu0
        %v730 = vadd.f32 0.0, %v729
        %v731 = vpop.f32.mrb[0].mxu0
        %v732 = vpop.f32.mrb[0].mxu0
        %v733 = vadd.f32 0.0, %v732
        %v734 = vpop.f32.mrb[0].mxu0
        %735 = vdwg.mxu0
        %736 = vmatprep.subr.bf16.mxu0 0
        %737 = vmatpush1.bf16.msra.mxu0 %v609
        %738 = vmatprep.subr.bf16.mxu0 0
        %739 = vmatpush1.bf16.msra.mxu0 %v610
        %740 = vmatprep.subr.bf16.mxu0 0
        %741 = vmatpush1.bf16.msra.mxu0 %v611
        %742 = vmatprep.subr.bf16.mxu0 0
        %743 = vmatpush1.bf16.msra.mxu0 %v612
        %744 = vmatprep.subr.bf16.mxu0 0
        %745 = vmatpush1.bf16.msra.mxu0 %v613
        %746 = vmatprep.subr.bf16.mxu0 0
        %747 = vmatpush1.bf16.msra.mxu0 %v614
        %748 = vmatprep.subr.bf16.mxu0 0
        %749 = vmatpush1.bf16.msra.mxu0 %v615
        %750 = vmatprep.subr.bf16.mxu0 0
        %751 = vmatpush1.bf16.msra.mxu0 %v616
        %752 = vmatprep.subr.bf16.mxu0 0
        %753 = vmatpush1.bf16.msra.mxu0 %v617
        %754 = vmatprep.subr.bf16.mxu0 0
        %755 = vmatpush1.bf16.msra.mxu0 %v618
        %756 = vmatprep.subr.bf16.mxu0 0
        %757 = vmatpush1.bf16.msra.mxu0 %v619
        %758 = vmatprep.subr.bf16.mxu0 0
        %759 = vmatpush1.bf16.msra.mxu0 %v620
        %760 = vmatprep.subr.bf16.mxu0 0
        %761 = vmatpush1.bf16.msra.mxu0 %v621
        %762 = vmatprep.subr.bf16.mxu0 0
        %763 = vmatpush1.bf16.msra.mxu0 %v622
        %764 = vmatprep.subr.bf16.mxu0 0
        %765 = vmatpush1.bf16.msra.mxu0 %v623
        %766 = vmatprep.subr.bf16.mxu0 0
        %767 = vmatpush1.bf16.msra.mxu0 %v624
        %768 = vmatprep.mubr.bf16.mxu0 %v295
        %769 = vmatmul.mubr.bf16.gmra.mrb[0].mxu0 %v294
        %v770 = vpop.f32.mrb[0].mxu0
        %v771 = vadd.f32 %v730, %v770
        %v772 = vpop.f32.mrb[0].mxu0
        %v773 = vpop.f32.mrb[0].mxu0
        %v774 = vadd.f32 %v733, %v773
        %v775 = vpop.f32.mrb[0].mxu0
        %776 = vdwg.mxu0
        %777 = vmatprep.subr.bf16.mxu0 0
        %778 = vmatpush1.bf16.msra.mxu0 %v625
        %779 = vmatprep.subr.bf16.mxu0 0
        %780 = vmatpush1.bf16.msra.mxu0 %v626
        %781 = vmatprep.subr.bf16.mxu0 0
        %782 = vmatpush1.bf16.msra.mxu0 %v627
        %783 = vmatprep.subr.bf16.mxu0 0
        %784 = vmatpush1.bf16.msra.mxu0 %v628
        %785 = vmatprep.subr.bf16.mxu0 0
        %786 = vmatpush1.bf16.msra.mxu0 %v629
        %787 = vmatprep.subr.bf16.mxu0 0
        %788 = vmatpush1.bf16.msra.mxu0 %v630
        %789 = vmatprep.subr.bf16.mxu0 0
        %790 = vmatpush1.bf16.msra.mxu0 %v631
        %791 = vmatprep.subr.bf16.mxu0 0
        %792 = vmatpush1.bf16.msra.mxu0 %v632
        %793 = vmatprep.subr.bf16.mxu0 0
        %794 = vmatpush1.bf16.msra.mxu0 %v633
        %795 = vmatprep.subr.bf16.mxu0 0
        %796 = vmatpush1.bf16.msra.mxu0 %v634
        %797 = vmatprep.subr.bf16.mxu0 0
        %798 = vmatpush1.bf16.msra.mxu0 %v635
        %799 = vmatprep.subr.bf16.mxu0 0
        %800 = vmatpush1.bf16.msra.mxu0 %v636
        %801 = vmatprep.subr.bf16.mxu0 0
        %802 = vmatpush1.bf16.msra.mxu0 %v637
        %803 = vmatprep.subr.bf16.mxu0 0
        %804 = vmatpush1.bf16.msra.mxu0 %v638
        %805 = vmatprep.subr.bf16.mxu0 0
        %806 = vmatpush1.bf16.msra.mxu0 %v639
        %807 = vmatprep.subr.bf16.mxu0 0
        %808 = vmatpush1.bf16.msra.mxu0 %v640
        %809 = vmatprep.mubr.bf16.mxu0 %v297
        %810 = vmatmul.mubr.bf16.gmra.mrb[0].mxu0 %v296
        %v811 = vpop.f32.mrb[0].mxu0
        %v812 = vadd.f32 %v771, %v811
        %v813 = vpop.f32.mrb[0].mxu0
        %v814 = vpop.f32.mrb[0].mxu0
        %v815 = vadd.f32 %v774, %v814
        %v816 = vpop.f32.mrb[0].mxu0
        %817 = vdwg.mxu0
        %818 = vmatprep.subr.bf16.mxu0 0
        %819 = vmatpush1.bf16.msra.mxu0 %v641
        %820 = vmatprep.subr.bf16.mxu0 0
        %821 = vmatpush1.bf16.msra.mxu0 0
        %822 = vmatprep.subr.bf16.mxu0 0
        %823 = vmatpush1.bf16.msra.mxu0 0
        %824 = vmatprep.subr.bf16.mxu0 0
        %825 = vmatpush1.bf16.msra.mxu0 0
        %826 = vmatprep.subr.bf16.mxu0 0
        %827 = vmatpush1.bf16.msra.mxu0 0
        %828 = vmatprep.subr.bf16.mxu0 0
        %829 = vmatpush1.bf16.msra.mxu0 0
        %830 = vmatprep.subr.bf16.mxu0 0
        %831 = vmatpush1.bf16.msra.mxu0 0
        %832 = vmatprep.subr.bf16.mxu0 0
        %833 = vmatpush1.bf16.msra.mxu0 0
        %834 = vmatprep.subr.bf16.mxu0 0
        %835 = vmatpush1.bf16.msra.mxu0 0
        %836 = vmatprep.subr.bf16.mxu0 0
        %837 = vmatpush1.bf16.msra.mxu0 0
        %838 = vmatprep.subr.bf16.mxu0 0
        %839 = vmatpush1.bf16.msra.mxu0 0
        %840 = vmatprep.subr.bf16.mxu0 0
        %841 = vmatpush1.bf16.msra.mxu0 0
        %842 = vmatprep.subr.bf16.mxu0 0
        %843 = vmatpush1.bf16.msra.mxu0 0
        %844 = vmatprep.subr.bf16.mxu0 0
        %845 = vmatpush1.bf16.msra.mxu0 0
        %846 = vmatprep.subr.bf16.mxu0 0
        %847 = vmatpush1.bf16.msra.mxu0 0
        %848 = vmatprep.subr.bf16.mxu0 0
        %849 = vmatpush1.bf16.msra.mxu0 0
        %850 = vmatprep.mubr.bf16.mxu0 0
        %851 = vmatmul.mubr.bf16.gmra.mrb[0].mxu0 %v693
        %v852 = vpop.f32.mrb[0].mxu0
        %v853 = vadd.f32 %v812, %v852
        %v854 = vpop.f32.mrb[0].mxu0
        %v855 = vpop.f32.mrb[0].mxu0
        %v856 = vadd.f32 %v815, %v855
        %v857 = vpop.f32.mrb[0].mxu0
        %858 = vdwg.mxu0
        %v859 = vmax.f32 %v853, 0.0
        %v860 = vmax.f32 %v856, 0.0
        %v861 = vpack.c.bf16 %v860, %v859
        %v862 = vld [vmem:[%s2] sm:$0xf]
        %v863 = vld [vmem:[%s2 + $0x4] sm:$0xf]
        %v864 = vld [vmem:[%s2 + $0x8] sm:$0xf]
        %v865 = vld [vmem:[%s2 + $0xc] sm:$0xf]
        %v866 = vld [vmem:[%s2 + $0x10] sm:$0xf]
        %v867 = vld [vmem:[%s2 + $0x14] sm:$0xf]
        %v868 = vld [vmem:[%s2 + $0x18] sm:$0xf]
        %v869 = vld [vmem:[%s2 + $0x1c] sm:$0xf]
        %v870 = vld [vmem:[%s2 + $0x20] sm:$0xf]
        %v871 = vld [vmem:[%s2 + $0x24] sm:$0xf]
        %v872 = vld [vmem:[%s2 + $0x28] sm:$0xf]
        %v873 = vld [vmem:[%s2 + $0x2c] sm:$0xf]
        %v874 = vld [vmem:[%s2 + $0x30] sm:$0xf]
        %v875 = vld [vmem:[%s2 + $0x34] sm:$0xf]
        %v876 = vld [vmem:[%s2 + $0x38] sm:$0xf]
        %v877 = vld [vmem:[%s2 + $0x3c] sm:$0xf]
        %v894 = vunpack.c.l.b16 %v862
        %v895 = vunpack.c.l.b16 %v863
        %v896 = vunpack.c.l.b16 %v864
        %v897 = vunpack.c.l.b16 %v865
        %v898 = vunpack.c.l.b16 %v866
        %v899 = vunpack.c.l.b16 %v867
        %v900 = vunpack.c.l.b16 %v868
        %v901 = vunpack.c.l.b16 %v869
        %v902 = vunpack.c.l.b16 %v870
        %v903 = vunpack.c.l.b16 %v871
        %v904 = vunpack.c.l.b16 %v872
        %v905 = vunpack.c.l.b16 %v873
        %v906 = vunpack.c.l.b16 %v874
        %v907 = vunpack.c.l.b16 %v875
        %v908 = vunpack.c.l.b16 %v876
        %v909 = vunpack.c.l.b16 %v877
        %v910 = vpack.c.b16 %v895, %v894
        %v911 = vpack.c.b16 %v897, %v896
        %v912 = vpack.c.b16 %v899, %v898
        %v913 = vpack.c.b16 %v901, %v900
        %v914 = vpack.c.b16 %v903, %v902
        %v915 = vpack.c.b16 %v905, %v904
        %v916 = vpack.c.b16 %v907, %v906
        %v917 = vpack.c.b16 %v909, %v908
        %926 = vmatprep.subr.bf16.mxu0 0
        %927 = vmatpush1.bf16.msra.mxu0 %v910
        %928 = vmatprep.subr.bf16.mxu0 0
        %929 = vmatpush1.bf16.msra.mxu0 %v911
        %930 = vmatprep.subr.bf16.mxu0 0
        %931 = vmatpush1.bf16.msra.mxu0 %v912
        %932 = vmatprep.subr.bf16.mxu0 0
        %933 = vmatpush1.bf16.msra.mxu0 %v913
        %934 = vmatprep.subr.bf16.mxu0 0
        %935 = vmatpush1.bf16.msra.mxu0 %v914
        %936 = vmatprep.subr.bf16.mxu0 0
        %937 = vmatpush1.bf16.msra.mxu0 %v915
        %938 = vmatprep.subr.bf16.mxu0 0
        %939 = vmatpush1.bf16.msra.mxu0 %v916
        %940 = vmatprep.subr.bf16.mxu0 0
        %941 = vmatpush1.bf16.msra.mxu0 %v917
        %942 = vmatprep.subr.bf16.mxu0 0
        %943 = vmatpush1.bf16.msra.mxu0 0
        %944 = vmatprep.subr.bf16.mxu0 0
        %945 = vmatpush1.bf16.msra.mxu0 0
        %946 = vmatprep.subr.bf16.mxu0 0
        %947 = vmatpush1.bf16.msra.mxu0 0
        %948 = vmatprep.subr.bf16.mxu0 0
        %949 = vmatpush1.bf16.msra.mxu0 0
        %950 = vmatprep.subr.bf16.mxu0 0
        %951 = vmatpush1.bf16.msra.mxu0 0
        %952 = vmatprep.subr.bf16.mxu0 0
        %953 = vmatpush1.bf16.msra.mxu0 0
        %954 = vmatprep.subr.bf16.mxu0 0
        %955 = vmatpush1.bf16.msra.mxu0 0
        %956 = vmatprep.subr.bf16.mxu0 0
        %957 = vmatpush1.bf16.msra.mxu0 0
        %958 = vmatprep.mubr.bf16.mxu0 0
        %959 = vmatmul.mubr.bf16.gmra.mrb[0].mxu0 %v861
        %v960 = vpop.f32.mrb[0].mxu0
        %v961 = vadd.f32 0.0, %v960
        %v962 = vpop.f32.mrb[0].mxu0
        %v963 = vpop.f32.mrb[0].mxu0
        %v964 = vadd.f32 0.0, %v963
        %v965 = vpop.f32.mrb[0].mxu0
        %966 = vdwg.mxu0
        %v967 = vmax.f32 %v961, 0.0
        %v968 = vmax.f32 %v964, 0.0
        %v969 = vpack.c.bf16 %v968, %v967
        %v970 = vld [vmem:[%s3] sm:$0xf]
        %v971 = vld [vmem:[%s3 + $0x4] sm:$0xf]
        %v972 = vld [vmem:[%s3 + $0x8] sm:$0xf]
        %v973 = vld [vmem:[%s3 + $0xc] sm:$0xf]
        %v974 = vld [vmem:[%s3 + $0x10] sm:$0xf]
        %v975 = vld [vmem:[%s3 + $0x14] sm:$0xf]
        %v976 = vld [vmem:[%s3 + $0x18] sm:$0xf]
        %v977 = vld [vmem:[%s3 + $0x1c] sm:$0xf]
        %v978 = vld [vmem:[%s4] sm:$0x1]
        %v980 = vlaneseq
        %v981 = vshrl.u32 %v980, 7
        %v982 = vsub.s32 0, %v981
        %v983 = vrot.slane %v978, %v982
        %v993 = vunpack.c.l.b16 %v970
        %v994 = vunpack.c.l.b16 %v971
        %v995 = vunpack.c.l.b16 %v972
        %v996 = vunpack.c.l.b16 %v973
        %v997 = vunpack.c.l.b16 %v974
        %v998 = vunpack.c.l.b16 %v975
        %v999 = vunpack.c.l.b16 %v976
        %v1000 = vunpack.c.l.b16 %v977
        %v1001 = vpack.c.b16 %v994, %v993
        %v1002 = vpack.c.b16 %v996, %v995
        %v1003 = vpack.c.b16 %v998, %v997
        %v1004 = vpack.c.b16 %v1000, %v999
        %vm1009 = vcmask 523264
        %v1011 = vsel %vm1009, %v969, 0
        %1013 = vmatprep.subr.bf16.mxu0 0
        %1014 = vmatpush1.bf16.msra.mxu0 %v1001
        %1015 = vmatprep.subr.bf16.mxu0 0
        %1016 = vmatpush1.bf16.msra.mxu0 %v1002
        %1017 = vmatprep.subr.bf16.mxu0 0
        %1018 = vmatpush1.bf16.msra.mxu0 %v1003
        %1019 = vmatprep.subr.bf16.mxu0 0
        %1020 = vmatpush1.bf16.msra.mxu0 %v1004
        %1021 = vmatprep.subr.bf16.mxu0 0
        %1022 = vmatpush1.bf16.msra.mxu0 0
        %1023 = vmatprep.subr.bf16.mxu0 0
        %1024 = vmatpush1.bf16.msra.mxu0 0
        %1025 = vmatprep.subr.bf16.mxu0 0
        %1026 = vmatpush1.bf16.msra.mxu0 0
        %1027 = vmatprep.subr.bf16.mxu0 0
        %1028 = vmatpush1.bf16.msra.mxu0 0
        %1029 = vmatprep.subr.bf16.mxu0 0
        %1030 = vmatpush1.bf16.msra.mxu0 0
        %1031 = vmatprep.subr.bf16.mxu0 0
        %1032 = vmatpush1.bf16.msra.mxu0 0
        %1033 = vmatprep.subr.bf16.mxu0 0
        %1034 = vmatpush1.bf16.msra.mxu0 0
        %1035 = vmatprep.subr.bf16.mxu0 0
        %1036 = vmatpush1.bf16.msra.mxu0 0
        %1037 = vmatprep.subr.bf16.mxu0 0
        %1038 = vmatpush1.bf16.msra.mxu0 0
        %1039 = vmatprep.subr.bf16.mxu0 0
        %1040 = vmatpush1.bf16.msra.mxu0 0
        %1041 = vmatprep.subr.bf16.mxu0 0
        %1042 = vmatpush1.bf16.msra.mxu0 0
        %1043 = vmatprep.subr.bf16.mxu0 0
        %1044 = vmatpush1.bf16.msra.mxu0 0
        %1045 = vmatprep.mubr.bf16.mxu0 0
        %1046 = vmatmul.mubr.bf16.gmra.mrb[0].mxu0 %v1011
        %v1047 = vpop.f32.mrb[0].mxu0
        %v1048 = vadd.f32 %v983, %v1047
        %v1049 = vpop.f32.mrb[0].mxu0
        %v1050 = vpop.f32.mrb[0].mxu0
        %v1051 = vadd.f32 %v983, %v1050
        %v1052 = vpop.f32.mrb[0].mxu0
        %1053 = vdwg.mxu0
        %v1054 = vpack.c.bf16 %v1051, %v1048
        %v1056 = vunpack.c.l.b16 %v1054
        %v1057 = vunpack.c.h.b16 %v1054
        %v1058 = vpack.c.b16 %v1056, %v1056
        %v1059 = vpack.c.b16 %v1057, %v1057
        %1062 = vst [vmem:[%s265] sm:$0xf] %v1058
        %1063 = vst [vmem:[%s265 + $0x4] sm:$0xf] %v1059
        %s1064 = sand.u32 %s141, 1
        %s1065 = scalar_lea.sflag [#allocation4], %s1064
        %s1066 = sand.u32 %s141, 1
        %s1067 = smul.addr %s1066, 8
        %s1068 = scalar_lea.vmem [#allocation7], %s1067
        // Predicated region
        $region49: #{tpu_custom_call.1} parent=39 // pred_check
          %p1069 = pneg %p151
        $region50: #{tpu_custom_call.1} parent=39 // pred_check_branch
          %1071 = sbr.rel (%p1069) target = $region52
        $region51: #{tpu_custom_call.1} parent=39 // pred_region
          %s1072 = smul.u32 2, %s23
          %s1073 = ssub.s32 3, %s1072
          %p1074 = scmp.lt.s32.totalorder %s1073, 2
          %s1075 = scalar_select %p1074, %s1073, 2
          %s1076 = smul.u32 64, %s1075
          %s1078 = ssub.s32 128, %s1076
          %1079 = vsyncadd %s1065, %s1078
          %p1080 = scmp.ne.s32.totalorder 0, %s1076
          %s1081 = smul.addr %s1072, 64
          %s1082 = scalar_lea.hbm %s5, %s1081
          %s1083 = smul.u32 4, %s1075
          %s1084 = sshll.u32 %s1068, 4
          %s1085 = int_to_ptr.vmem [resolvable:$true] %s1084
          %s1086 = sshll.u32 %s1083, 4
          %1090 = dma.vmem_to_hbm [thread:$0]  (%p1080), %s1085, %s1086, %s1082, %s1065, 64, 64, 4
        $region52: #{tpu_custom_call.1} parent=39 // pred_fallthru
          _
      $region40: #{tpu_custom_call.1} parent=5 // pred_fallthru
        _
      %p1091 = scmp.le.s32.totalorder 2, %s18
      // Predicated region
      $region53: #{tpu_custom_call.1} parent=5 // pred_check
        %p1092 = pneg %p1091
      $region54: #{tpu_custom_call.1} parent=5 // pred_check_branch
        %1094 = sbr.rel (%p1092) target = $region56
      $region55: #{tpu_custom_call.1} parent=5 // pred_region
        %s1095 = ssub.s32 %s18, 2
        // Predicated region
        $region57: #{tpu_custom_call.1} parent=55 // pred_check
          %p1096 = pneg %p157
        $region58: #{tpu_custom_call.1} parent=55 // pred_check_branch
          %1098 = sbr.rel (%p1096) target = $region60
        $region59: #{tpu_custom_call.1} parent=55 // pred_region
          %s1099 = sand.u32 %s142, 1
          %s1100 = scalar_lea.sflag [#allocation4], %s1099
          %s1101 = sand.u32 %s142, 1
          %s1102 = smul.addr %s1101, 8
          %s1103 = scalar_lea.vmem [#allocation7], %s1102
          %1104 = dma.done %s1100, 128
        $region60: #{tpu_custom_call.1} parent=55 // pred_fallthru
          _
      $region56: #{tpu_custom_call.1} parent=5 // pred_fallthru
        _
    $region6: #{tpu_custom_call.1} parent=1 // loop_footer
      %s22 = sadd.s32 1, %s18
    $region7: #{tpu_custom_call.1} parent=1 // loop_footer_branch
      %17 = sbr.rel target = $region3
    $region8: #{tpu_custom_call.1} parent=1 // loop_exit
      _
    %1105 = vsyncpa [#allocation3], 1
    %s1106 = scalar_lea.sflag [#allocation3], 1
    %1107 = vsyncpa %s1106, 1
    %1108 = vsyncpa [#allocation6], 1
    %1109 = vsyncpa [#allocation4], 1
    %s1110 = scalar_lea.sflag [#allocation4], 1
    %1111 = vsyncpa %s1110, 1

</llo_original>
